<compile_context>
chip_gen: v7x
topology: tpu7x:2x2x1
jax: 0.10.0
libtpu: 0.0.40
codegen_flags: <defaults>
</compile_context>

<pallas_src>
import functools

import jax
import jax.numpy as jnp
from jax import lax
from jax.experimental import pallas as pl
from jax.experimental.pallas import tpu as pltpu


_LANE = 128
_MAX_HW_TILE = 8192                      # lane-aligned spatial chunk (mult of 128)
_VMEM_BUDGET = 24 * 1024 * 1024          # target working set: 2x in + 2x out + scratch
_VMEM_LIMIT = 32 * 1024 * 1024           # scoped-VMEM request; safe on v5e/v6e/v7x


def _round_up(x, m):
    return (x + m - 1) // m * m


def _catavgmax_kernel(x_ref, out_ref, sum_sc, max_sc, *, hw_total, hw_tile,
                      mask_tail):
    k = pl.program_id(1)
    nk = pl.num_programs(1)

    @pl.when(k == 0)
    def _init():
        sum_sc[...] = jnp.zeros_like(sum_sc)
        max_sc[...] = jnp.full_like(max_sc, -jnp.inf)

    x = x_ref[...]                                   # (tm, hw_tile), storage dtype

    def _accumulate(x_sum, x_max):
        # Sum accumulates in f32 without materializing a full f32 copy of the
        # block; max is exact in the storage dtype, only the (tm,1) result is
        # upcast for the running accumulator.
        sum_sc[...] += jnp.sum(x_sum, axis=-1, keepdims=True,
                               dtype=jnp.float32)
        max_sc[...] = jnp.maximum(
            max_sc[...],
            jnp.max(x_max, axis=-1, keepdims=True).astype(jnp.float32))

    if not mask_tail:
        _accumulate(x, x)
    else:
        # Only the final spatial block is partially valid; keep every other
        # block on the fast pure-stream path.
        @pl.when(k != nk - 1)
        def _fast():
            _accumulate(x, x)

        @pl.when(k == nk - 1)
        def _tail():
            rem = hw_total - k * hw_tile             # number of valid lanes
            lane = lax.broadcasted_iota(jnp.int32, (1, hw_tile), 1)
            valid = lane < rem
            _accumulate(jnp.where(valid, x, jnp.zeros_like(x)),
                        jnp.where(valid, x, jnp.full_like(x, -jnp.inf)))

    @pl.when(k == nk - 1)
    def _finalize():
        avg = sum_sc[...] * (1.0 / hw_total)         # true HW divisor
        out_ref[...] = jnp.concatenate([avg, max_sc[...]],
                                       axis=1).astype(out_ref.dtype)


def _pick_tiles(nc, hw, itemsize):
    """dtype-aware, lane-padding-aware (row_tile, spatial_tile)."""
    sublane = max(8, 32 // itemsize)     # f32: 8, bf16: 16, fp8/int8: 32
    hw_tile = hw if hw <= _MAX_HW_TILE else _MAX_HW_TILE

    # Per-row VMEM footprint, counting the 128-lane padding of every tile:
    #   input block (double-buffered), (tm,2) output block padded to 128 lanes
    #   (double-buffered), two (tm,1) f32 scratch columns padded to 128 lanes.
    in_row = 2 * _round_up(hw_tile, _LANE) * itemsize
    out_row = 2 * _LANE * itemsize
    scr_row = 2 * _LANE * 4
    tm = _VMEM_BUDGET // (in_row + out_row + scr_row)
    tm = max(sublane, (tm // sublane) * sublane)

    if tm >= nc:
        if nc >= 2 * sublane:
            # Keep >= 2 row blocks so the "parallel" axis can be split across
            # v7x's two TensorCores.
            tm = _round_up(pl.cdiv(nc, 2), sublane)
        else:
            tm = nc                      # block == full row dim is legal
    return tm, hw_tile


def adaptive_catavgmax_pool2d(x, output_size=1):
    # TODO(synk): only output_size=1 (global pooling) is implemented here.
    assert output_size == 1, "Pallas kernel supports output_size=1 only"
    assert jnp.issubdtype(x.dtype, jnp.floating), "floating-point input expected"
    N, C, H, W = x.shape
    NC, HW = N * C, H * W
    x2d = x.reshape(NC, HW)              # contiguous view, no HBM copy

    itemsize = jnp.dtype(x.dtype).itemsize
    tm, thw = _pick_tiles(NC, HW, itemsize)
    grid = (pl.cdiv(NC, tm), pl.cdiv(HW, thw))
    mask_tail = (HW % thw) != 0

    kernel = functools.partial(_catavgmax_kernel, hw_total=HW, hw_tile=thw,
                               mask_tail=mask_tail)

    cost = pl.CostEstimate(
        flops=2 * NC * HW,
        transcendentals=0,
        bytes_accessed=NC * HW * itemsize + NC * 2 * itemsize,
    )

    out2 = pl.pallas_call(
        kernel,
        out_shape=jax.ShapeDtypeStruct((NC, 2), x.dtype),
        grid_spec=pltpu.PrefetchScalarGridSpec(
            num_scalar_prefetch=0,
            grid=grid,
            in_specs=[pl.BlockSpec((tm, thw), lambda i, k: (i, k))],
            out_specs=pl.BlockSpec((tm, 2), lambda i, k: (i, 0)),
            scratch_shapes=[
                pltpu.VMEM((tm, 1), jnp.float32),    # running sum
                pltpu.VMEM((tm, 1), jnp.float32),    # running max
            ],
        ),
        compiler_params=pltpu.CompilerParams(
            dimension_semantics=("parallel", "arbitrary"),
            vmem_limit_bytes=_VMEM_LIMIT,
        ),
        cost_estimate=cost,
    )(x2d)

    avg = out2[:, 0].reshape(N, C, 1, 1)
    mx = out2[:, 1].reshape(N, C, 1, 1)
    return jnp.concatenate([avg, mx], axis=1)


def _reference(x):
    avg = jnp.mean(x, axis=(2, 3), keepdims=True)
    mx = jnp.max(x, axis=(2, 3), keepdims=True)
    return jnp.concatenate([avg, mx], axis=1)


if __name__ == "__main__":
    key = jax.random.PRNGKey(0)

    # Small base case (single spatial block, fast path).
    x = jax.random.normal(key, (2, 4, 16, 16), dtype=jnp.float32)
    out = jax.block_until_ready(adaptive_catavgmax_pool2d(x, output_size=1))
    ref = _reference(x)
    assert out.shape == (2, 8, 1, 1), out.shape
    assert jnp.allclose(out, ref, atol=1e-5, rtol=1e-5), "mismatch vs reference"

    # Exercise the multi-spatial-block + tail-mask path (HW > 8192, not a
    # multiple of the spatial tile).
    x2 = jax.random.normal(jax.random.PRNGKey(1), (1, 16, 100, 100),
                           dtype=jnp.float32)
    out2 = jax.block_until_ready(adaptive_catavgmax_pool2d(x2, output_size=1))
    ref2 = _reference(x2)
    assert out2.shape == (1, 32, 1, 1), out2.shape
    assert jnp.allclose(out2, ref2, atol=1e-4, rtol=1e-5), "tail-mask mismatch"

    print("KERNEL_OK")
</pallas_src>

<mosaic_0001>
module attributes {stable_mosaic.version = 11 : i64} {
  func.func @_catavgmax_kernel(%arg0: i32, %arg1: i32, %arg2: memref<8x256xf32, #tpu.memory_space<vmem>>, %arg3: memref<8x2xf32, #tpu.memory_space<vmem>>, %arg4: memref<8x1xf32, #tpu.memory_space<vmem>>, %arg5: memref<8x1xf32, #tpu.memory_space<vmem>>) attributes {dimension_semantics = [#tpu.dimension_semantics<parallel>, #tpu.dimension_semantics<arbitrary>], iteration_bounds = array<i64: 1, 1>, scalar_prefetch = 0 : i64, scratch_operands = 2 : i64, tpu.core_type = #tpu.core_type<tc>, window_params = [{transform_indices = @transform_0, window_bounds = array<i64: 8, 256>}, {transform_indices = @transform_1, window_bounds = array<i64: 8, 2>}]} {
    %c0_i32 = arith.constant 0 : i32
    %0 = arith.cmpi eq, %arg1, %c0_i32 : i32
    %1 = arith.extui %0 : i1 to i32
    %c0_i32_0 = arith.constant 0 : i32
    %2 = arith.cmpi ne, %1, %c0_i32_0 : i32
    scf.if %2 {
      %cst_13 = arith.constant 0.000000e+00 : f32
      %17 = vector.broadcast %cst_13 : f32 to vector<8x1xf32>
      %c0_14 = arith.constant 0 : index
      %c0_15 = arith.constant 0 : index
      %18 = vector.load %arg4[%c0_14, %c0_15] : memref<8x1xf32, #tpu.memory_space<vmem>>, vector<8x1xf32>
      tpu.vector_store %arg4[%c0_14, %c0_15], %17 {strides = array<i32>} : memref<8x1xf32, #tpu.memory_space<vmem>>, vector<8x1xf32>,
      %cst_16 = arith.constant 0xFF800000 : f32
      %19 = vector.broadcast %cst_16 : f32 to vector<8x1xf32>
      %c0_17 = arith.constant 0 : index
      %c0_18 = arith.constant 0 : index
      %20 = vector.load %arg5[%c0_17, %c0_18] : memref<8x1xf32, #tpu.memory_space<vmem>>, vector<8x1xf32>
      tpu.vector_store %arg5[%c0_17, %c0_18], %19 {strides = array<i32>} : memref<8x1xf32, #tpu.memory_space<vmem>>, vector<8x1xf32>,
    } else {
    }
    %c0 = arith.constant 0 : index
    %c0_1 = arith.constant 0 : index
    %3 = vector.load %arg2[%c0, %c0_1] : memref<8x256xf32, #tpu.memory_space<vmem>>, vector<8x256xf32>
    %c0_2 = arith.constant 0 : index
    %c0_3 = arith.constant 0 : index
    %4 = vector.load %arg4[%c0_2, %c0_3] : memref<8x1xf32, #tpu.memory_space<vmem>>, vector<8x1xf32>
    %cst = arith.constant dense<0.000000e+00> : vector<8xf32>
    %5 = vector.multi_reduction <add>, %3, %cst [1] : vector<8x256xf32> to vector<8xf32>
    %6 = vector.shape_cast %5 : vector<8xf32> to vector<8x1xf32>
    %7 = arith.addf %4, %6 : vector<8x1xf32>
    %c0_4 = arith.constant 0 : index
    %c0_5 = arith.constant 0 : index
    %8 = vector.load %arg4[%c0_4, %c0_5] : memref<8x1xf32, #tpu.memory_space<vmem>>, vector<8x1xf32>
    tpu.vector_store %arg4[%c0_4, %c0_5], %7 {strides = array<i32>} : memref<8x1xf32, #tpu.memory_space<vmem>>, vector<8x1xf32>,
    %c0_6 = arith.constant 0 : index
    %c0_7 = arith.constant 0 : index
    %9 = vector.load %arg5[%c0_6, %c0_7] : memref<8x1xf32, #tpu.memory_space<vmem>>, vector<8x1xf32>
    %cst_8 = arith.constant dense<0xFF800000> : vector<8xf32>
    %10 = vector.multi_reduction <maximumf>, %3, %cst_8 [1] : vector<8x256xf32> to vector<8xf32>
    %11 = vector.shape_cast %10 : vector<8xf32> to vector<8x1xf32>
    %12 = arith.maximumf %9, %11 : vector<8x1xf32>
    %c0_9 = arith.constant 0 : index
    %c0_10 = arith.constant 0 : index
    %13 = vector.load %arg5[%c0_9, %c0_10] : memref<8x1xf32, #tpu.memory_space<vmem>>, vector<8x1xf32>
    tpu.vector_store %arg5[%c0_9, %c0_10], %12 {strides = array<i32>} : memref<8x1xf32, #tpu.memory_space<vmem>>, vector<8x1xf32>,
    %c0_i32_11 = arith.constant 0 : i32
    %14 = arith.cmpi eq, %arg1, %c0_i32_11 : i32
    %15 = arith.extui %14 : i1 to i32
    %c0_i32_12 = arith.constant 0 : i32
    %16 = arith.cmpi ne, %15, %c0_i32_12 : i32
    scf.if %16 {
      %c0_13 = arith.constant 0 : index
      %c0_14 = arith.constant 0 : index
      %17 = vector.load %arg4[%c0_13, %c0_14] : memref<8x1xf32, #tpu.memory_space<vmem>>, vector<8x1xf32>
      %cst_15 = arith.constant 3.906250e-03 : f32
      %18 = vector.broadcast %cst_15 : f32 to vector<8x1xf32>
      %19 = arith.mulf %17, %18 : vector<8x1xf32>
      %c0_16 = arith.constant 0 : index
      %c0_17 = arith.constant 0 : index
      %20 = vector.load %arg5[%c0_16, %c0_17] : memref<8x1xf32, #tpu.memory_space<vmem>>, vector<8x1xf32>
      %21 = tpu.concatenate %19, %20 in 1 : vector<8x1xf32>, vector<8x1xf32> -> vector<8x2xf32>
      %c0_18 = arith.constant 0 : index
      %c0_19 = arith.constant 0 : index
      %22 = vector.load %arg3[%c0_18, %c0_19] : memref<8x2xf32, #tpu.memory_space<vmem>>, vector<8x2xf32>
      tpu.vector_store %arg3[%c0_18, %c0_19], %21 {strides = array<i32>} : memref<8x2xf32, #tpu.memory_space<vmem>>, vector<8x2xf32>,
    } else {
    }
    return
  }
  func.func @transform_0(%arg0: i32, %arg1: i32) -> (i32, i32) {
    %c0_i32 = arith.constant 0 : i32
    return %arg0, %arg1 : i32, i32
  }
  func.func @transform_1(%arg0: i32, %arg1: i32) -> (i32, i32) {
    %c0_i32 = arith.constant 0 : i32
    %c0_i32_0 = arith.constant 0 : i32
    return %arg0, %c0_i32 : i32, i32
  }
}

</mosaic_0001>

<llo_original>
// kernel: tpu_custom_call.1
$region0: #{tpu_custom_call.1}
  #allocation0 [shape = 'u32[]', space=smem, size = 0x4, offset = 0x4, fixed_abs, tag = 'smem constant byte address 0x4 - core index']
  #allocation1 [shape = 'u32[144,128]{1,0:T(1,128)}', space=vmem, size = 0x12000, scoped, tag = 'internal scratch']
  #allocation2 [shape = 'f32[8,1]{1,0:T(8,128)}', space=vmem, size = 0x1000, scoped, tag = 'scratch operand']
  #allocation3 [shape = 'f32[8,1]{1,0:T(8,128)}', space=vmem, size = 0x1000, scoped, tag = 'scratch operand']
  %s0 = inlined_call_operand.hbm [shape: f32[8,256], index: 0, kind: input, shape index: {}]
  %s1 = inlined_call_operand.vmem [shape: f32[8,2], index: 1, kind: output, shape index: {}]
  %s2 = sld [smem:[#allocation0]]
  $region26: #{tpu_custom_call.1} parent=0
    _
  %s4 = ssub.s32 1, %s2
  %s5 = scalar_select 0, %s4, %s2
  $region1: #{tpu_custom_call.1} parent=0
    #allocation4 [shape = 'u8[8192]{0}', space=vmem, size = 0x2000, scoped, tag = 'input window, operand 0, single buffered']
    #allocation5 [shape = 's32[1]{0}', space=sflag, size = 0x4, scoped, tag = 'scoped memory for tpu_custom_call.1']
    %6 = vsyncpa [#allocation5], 0
    // Predicated region
    $region2: #{tpu_custom_call.1} parent=1 // pred_check
      _
    $region3: #{tpu_custom_call.1} parent=1 // pred_check_branch
      %8 = sbr.rel (0) target = $region5
    $region4: #{tpu_custom_call.1} parent=1 // pred_region
      %s10 = ssub.s32 256, 256
      %11 = vsyncadd [#allocation5], %s10
      %s13 = sshll.u32 [#allocation4], 4
      %s14 = int_to_ptr.vmem [resolvable:$true] %s13
      %16 = dma.hbm_to_vmem [thread:$0]  %s0, 256, %s14, [#allocation5]
    $region5: #{tpu_custom_call.1} parent=1 // pred_fallthru
      _
    // Predicated region
    $region6: #{tpu_custom_call.1} parent=1 // pred_check
      _
    $region7: #{tpu_custom_call.1} parent=1 // pred_check_branch
      %18 = sbr.rel (0) target = $region9
    $region8: #{tpu_custom_call.1} parent=1 // pred_region
      %19 = dma.done [#allocation5], 256
    $region9: #{tpu_custom_call.1} parent=1 // pred_fallthru
      _
    %p20 = scmp.eq.s32.totalorder 0, 0
    // Predicated region
    $region10: #{tpu_custom_call.1} parent=1 // pred_check
      %p21 = pneg %p20
    $region11: #{tpu_custom_call.1} parent=1 // pred_check_branch
      %23 = sbr.rel (%p21) target = $region13
    $region12: #{tpu_custom_call.1} parent=1 // pred_region
      %vm24 = vcmask 7168
      %25 = vst.msk [vmem:[#allocation2] sm:$0xff] %vm24, 0.0
      %26 = vst.msk [vmem:[#allocation3] sm:$0xff] %vm24, -inf
    $region13: #{tpu_custom_call.1} parent=1 // pred_fallthru
      _
    %v27 = vld [vmem:[#allocation4] sm:$0xff]
    %v28 = vld [vmem:[#allocation4 + $0x8] sm:$0xff]
    %v29 = vld [vmem:[#allocation2] sm:$0xff]
    %v30 = vadd.f32 %v27, %v28
    %31 = vadd.xlane.f32.xlu0 %v30
    %v32 = vpop.xlane.xlu0 %31
    %v33 = vadd.f32 %v29, %v32
    %vm34 = vcmask 7168
    %35 = vst.msk [vmem:[#allocation2] sm:$0xff] %vm34, %v33
    %v36 = vld [vmem:[#allocation3] sm:$0xff]
    %v37 = vmax.f32 %v27, %v28
    %38 = vmax.xlane.f32.xlu0 %v37
    %v39 = vpop.xlane.xlu0 %38
    %v40 = vmax.f32 %v36, %v39
    %41 = vst.msk [vmem:[#allocation3] sm:$0xff] %vm34, %v40
    // Predicated region
    $region14: #{tpu_custom_call.1} parent=1 // pred_check
      %p42 = pneg %p20
    $region15: #{tpu_custom_call.1} parent=1 // pred_check_branch
      %44 = sbr.rel (%p42) target = $region17
    $region16: #{tpu_custom_call.1} parent=1 // pred_region
      %v45 = vld [vmem:[#allocation2] sm:$0xff]
      %v46 = vmul.f32 %v45, 0.00390625
      %v47 = vld [vmem:[#allocation3] sm:$0xff]
      %49 = vrot.lane.b32.xlu0 %v47, 1
      %v50 = vpop.permute.xlu0 %49
      %v52 = vsel %vm34, %v46, %v50
      %vm53 = vcmask 15360
      %54 = vst.msk [vmem:[%s1] sm:$0xff] %vm53, %v52
    $region17: #{tpu_custom_call.1} parent=1 // pred_fallthru
      _
    // Predicated region
    $region18: #{tpu_custom_call.1} parent=1 // pred_check
      _
    $region19: #{tpu_custom_call.1} parent=1 // pred_check_branch
      %56 = sbr.rel (0) target = $region21
    $region20: #{tpu_custom_call.1} parent=1 // pred_region
      _
    $region21: #{tpu_custom_call.1} parent=1 // pred_fallthru
      _
    // Predicated region
    $region22: #{tpu_custom_call.1} parent=1 // pred_check
      _
    $region23: #{tpu_custom_call.1} parent=1 // pred_check_branch
      %58 = sbr.rel (0) target = $region25
    $region24: #{tpu_custom_call.1} parent=1 // pred_region
      _
    $region25: #{tpu_custom_call.1} parent=1 // pred_fallthru
      _
    %59 = vsyncpa [#allocation5], 1

</llo_original>
